<compile_context>
chip_gen: v6e
topology: v6e:2x2x1
jax: 0.10.0
libtpu: 0.0.40
codegen_flags: <defaults>
</compile_context>

<pallas_src>
import functools

import jax
import jax.numpy as jnp
from jax.experimental import pallas as pl
from jax.experimental.pallas import tpu as pltpu


# --------------------------------------------------------------------------
# Kernel: one lane tile of the folded activation matrix.
#   x_ref: (Cin, TL)   w_ref: (Cout, Cin)   b_ref: (Cout, 1)   o_ref: (Cout, TL)
# --------------------------------------------------------------------------
def out_conv_kernel(x_ref, w_ref, b_ref, o_ref):
    o_ref[...] = (
        jnp.dot(w_ref[...], x_ref[...], preferred_element_type=jnp.float32)
        + b_ref[...]
    )


# --------------------------------------------------------------------------
# Wrapper: fold batch into lanes, pad to a lane-dense multiple of 128,
# run a 1-D "parallel" grid over lane tiles, un-fold the result.
# --------------------------------------------------------------------------
@jax.jit
def output_conv_forward(x, w, b):
    """Conv1d(in_channels, out_channels, kernel_size=1).

    x: (N, Cin, L) float32
    w: (Cout, Cin) float32   (PyTorch weight (Cout, Cin, 1) squeezed)
    b: (Cout, 1)  float32
    returns (N, Cout, L) float32
    """
    n, cin, L = x.shape
    cout = w.shape[0]

    # Fold batch into the lane (last) dimension: (Cin, N*L).
    x2d = jnp.transpose(x, (1, 0, 2)).reshape(cin, n * L)

    cols = n * L
    pad = (-cols) % 128
    if pad:
        x2d = jnp.pad(x2d, ((0, 0), (0, pad)))
    cols_p = cols + pad

    # Biggest lane-dense tile that divides the padded width.
    tl = 128
    for cand in (2048, 1024, 512, 256, 128):
        if cols_p % cand == 0:
            tl = cand
            break

    out2d = pl.pallas_call(
        out_conv_kernel,
        out_shape=jax.ShapeDtypeStruct((cout, cols_p), jnp.float32),
        grid=(cols_p // tl,),
        in_specs=[
            pl.BlockSpec((cin, tl), lambda j: (0, j)),
            pl.BlockSpec((cout, cin), lambda j: (0, 0)),
            pl.BlockSpec((cout, 1), lambda j: (0, 0)),
        ],
        out_specs=pl.BlockSpec((cout, tl), lambda j: (0, j)),
        compiler_params=pltpu.CompilerParams(
            dimension_semantics=("parallel",),
        ),
    )(x2d, w, b)

    # Un-fold back to (N, Cout, L).
    out = out2d[:, :cols].reshape(cout, n, L)
    return jnp.transpose(out, (1, 0, 2))


# --------------------------------------------------------------------------
# Deterministic parameter init matching nn.Conv1d defaults (k=1):
#   U(-1/sqrt(Cin*k), +1/sqrt(Cin*k)) for both weight and bias.
# --------------------------------------------------------------------------
def init_output_conv_params(key, in_channels, out_channels):
    kw, kb = jax.random.split(key)
    bound = 1.0 / (in_channels ** 0.5)
    w = jax.random.uniform(kw, (out_channels, in_channels), jnp.float32, -bound, bound)
    b = jax.random.uniform(kb, (out_channels, 1), jnp.float32, -bound, bound)
    return w, b


if __name__ == "__main__":
    key = jax.random.PRNGKey(0)
    kx, kp = jax.random.split(key)

    # Small shapes consistent with the module's role (UNet head): N=2, Cin=64,
    # Cout=3, L=64  ->  folded lane dim = 128 (exactly one lane-dense vreg row).
    N, IN_CH, OUT_CH, L = 2, 64, 3, 64
    x = jax.random.normal(kx, (N, IN_CH, L), jnp.float32)
    w, b = init_output_conv_params(kp, IN_CH, OUT_CH)

    out = output_conv_forward(x, w, b)
    jax.block_until_ready(out)

    # Pure-JAX reference (Conv1d k=1 == per-position channel matmul).
    ref = jnp.einsum("oc,ncl->nol", w, x) + b[None, :, :]

    assert out.shape == (N, OUT_CH, L), out.shape
    assert bool(jnp.all(jnp.isfinite(out)))
    assert bool(jnp.allclose(out, ref, atol=1e-5, rtol=1e-5))
    print("KERNEL_OK")
</pallas_src>

<mosaic_0001>
module attributes {stable_mosaic.version = 11 : i64} {
  func.func @out_conv_kernel(%arg0: i32, %arg1: memref<64x128xf32, #tpu.memory_space<vmem>>, %arg2: memref<3x64xf32, #tpu.memory_space<vmem>>, %arg3: memref<3x1xf32, #tpu.memory_space<vmem>>, %arg4: memref<3x128xf32, #tpu.memory_space<vmem>>) attributes {dimension_semantics = [#tpu.dimension_semantics<parallel>], iteration_bounds = array<i64: 1>, scalar_prefetch = 0 : i64, scratch_operands = 0 : i64, tpu.core_type = #tpu.core_type<tc>, window_params = [{transform_indices = @transform_0, window_bounds = array<i64: 64, 128>}, {pipeline_mode = #tpu.pipeline_mode<synchronous>, transform_indices = @transform_1, window_bounds = array<i64: 3, 64>}, {pipeline_mode = #tpu.pipeline_mode<synchronous>, transform_indices = @transform_2, window_bounds = array<i64: 3, 1>}, {transform_indices = @transform_3, window_bounds = array<i64: 3, 128>}]} {
    %c0 = arith.constant 0 : index
    %c0_0 = arith.constant 0 : index
    %0 = vector.load %arg2[%c0, %c0_0] : memref<3x64xf32, #tpu.memory_space<vmem>>, vector<3x64xf32>
    %c0_1 = arith.constant 0 : index
    %c0_2 = arith.constant 0 : index
    %1 = vector.load %arg1[%c0_1, %c0_2] : memref<64x128xf32, #tpu.memory_space<vmem>>, vector<64x128xf32>
    %cst = arith.constant dense<0.000000e+00> : vector<3x128xf32>
    %2 = tpu.matmul %0, %1, %cst {dimension_numbers = #tpu.dot_dimension_numbers<[1], [0], [0], [1], [0, 0, 1, 1], [], []>} : vector<3x64xf32>, vector<64x128xf32>, vector<3x128xf32> -> vector<3x128xf32>
    %c0_3 = arith.constant 0 : index
    %c0_4 = arith.constant 0 : index
    %3 = vector.load %arg3[%c0_3, %c0_4] : memref<3x1xf32, #tpu.memory_space<vmem>>, vector<3x1xf32>
    %4 = vector.broadcast %3 : vector<3x1xf32> to vector<3x128xf32>
    %5 = arith.addf %2, %4 : vector<3x128xf32>
    %c0_5 = arith.constant 0 : index
    %c0_6 = arith.constant 0 : index
    %6 = vector.load %arg4[%c0_5, %c0_6] : memref<3x128xf32, #tpu.memory_space<vmem>>, vector<3x128xf32>
    tpu.vector_store %arg4[%c0_5, %c0_6], %5 {strides = array<i32>} : memref<3x128xf32, #tpu.memory_space<vmem>>, vector<3x128xf32>,
    return
  }
  func.func @transform_0(%arg0: i32) -> (i32, i32) {
    %c0_i32 = arith.constant 0 : i32
    %c0_i32_0 = arith.constant 0 : i32
    return %c0_i32, %arg0 : i32, i32
  }
  func.func @transform_1(%arg0: i32) -> (i32, i32) {
    %c0_i32 = arith.constant 0 : i32
    %c0_i32_0 = arith.constant 0 : i32
    %c0_i32_1 = arith.constant 0 : i32
    return %c0_i32, %c0_i32_0 : i32, i32
  }
  func.func @transform_2(%arg0: i32) -> (i32, i32) {
    %c0_i32 = arith.constant 0 : i32
    %c0_i32_0 = arith.constant 0 : i32
    %c0_i32_1 = arith.constant 0 : i32
    return %c0_i32, %c0_i32_0 : i32, i32
  }
  func.func @transform_3(%arg0: i32) -> (i32, i32) {
    %c0_i32 = arith.constant 0 : i32
    %c0_i32_0 = arith.constant 0 : i32
    return %c0_i32, %arg0 : i32, i32
  }
}

</mosaic_0001>

<llo_original>
// kernel: output_conv_forward.1
$region0: #{output_conv_forward.1}
  #allocation0 [shape = 'u32[]', space=smem, size = 0x4, offset = 0x4, fixed_abs, tag = 'smem constant byte address 0x4 - core index']
  #allocation1 [shape = 'u32[144,128]{1,0:T(1,128)}', space=vmem, size = 0x12000, scoped, tag = 'internal scratch']
  %s0 = inlined_call_operand.vmem [shape: f32[64,128], index: 0, kind: input, shape index: {}]
  %s1 = inlined_call_operand.vmem [shape: f32[3,64], index: 1, kind: input, shape index: {}]
  %s2 = inlined_call_operand.vmem [shape: f32[3,1], index: 2, kind: input, shape index: {}]
  %s3 = inlined_call_operand.vmem [shape: f32[3,128], index: 3, kind: output, shape index: {}]
  %s4 = sld [smem:[#allocation0]]
  $region22: #{output_conv_forward.1} parent=0
    _
  %s6 = ssub.s32 1, %s4
  %s7 = scalar_select 0, %s6, %s4
  // Predicated region
  $region2: #{output_conv_forward.1} parent=0 // pred_check
    _
  $region3: #{output_conv_forward.1} parent=0 // pred_check_branch
    %9 = sbr.rel (0) target = $region5
  $region4: #{output_conv_forward.1} parent=0 // pred_region
    _
  $region5: #{output_conv_forward.1} parent=0 // pred_fallthru
    _
  // Predicated region
  $region6: #{output_conv_forward.1} parent=0 // pred_check
    _
  $region7: #{output_conv_forward.1} parent=0 // pred_check_branch
    %11 = sbr.rel (0) target = $region9
  $region8: #{output_conv_forward.1} parent=0 // pred_region
    _
  $region9: #{output_conv_forward.1} parent=0 // pred_fallthru
    _
  // Predicated region
  $region10: #{output_conv_forward.1} parent=0 // pred_check
    _
  $region11: #{output_conv_forward.1} parent=0 // pred_check_branch
    %13 = sbr.rel (0) target = $region13
  $region12: #{output_conv_forward.1} parent=0 // pred_region
    _
  $region13: #{output_conv_forward.1} parent=0 // pred_fallthru
    _
  %v14 = vld [vmem:[%s1] sm:$0x7]
  %v15 = vld [vmem:[%s0] sm:$0xff]
  %v16 = vld [vmem:[%s0 + $0x8] sm:$0xff]
  %v17 = vld [vmem:[%s0 + $0x10] sm:$0xff]
  %v18 = vld [vmem:[%s0 + $0x18] sm:$0xff]
  %v19 = vld [vmem:[%s0 + $0x20] sm:$0xff]
  %v20 = vld [vmem:[%s0 + $0x28] sm:$0xff]
  %v21 = vld [vmem:[%s0 + $0x30] sm:$0xff]
  %v22 = vld [vmem:[%s0 + $0x38] sm:$0xff]
  %v23 = vld [vmem:[%s2] sm:$0x7]
  %25 = vset.pattern.permute.xlu0 0
  %26 = vperm.xlu0 %25, %v23
  %v27 = vpop.permute.xlu0 %26
  %vm29 = vcmask 523264
  %v31 = vsel %vm29, %v14, 0
  %33 = vmatprep.subr.mxu0 0.0
  %34 = vmatpush1.msra.mxu0 0.0
  %35 = vmatprep.subr.mxu0 0.0
  %36 = vmatpush1.msra.mxu0 0.0
  %37 = vmatprep.subr.mxu0 0.0
  %38 = vmatpush1.msra.mxu0 0.0
  %39 = vmatprep.subr.mxu0 0.0
  %40 = vmatpush1.msra.mxu0 0.0
  %41 = vmatprep.subr.mxu0 0.0
  %42 = vmatpush1.msra.mxu0 0.0
  %43 = vmatprep.subr.mxu0 0.0
  %44 = vmatpush1.msra.mxu0 0.0
  %45 = vmatprep.subr.mxu0 0.0
  %46 = vmatpush1.msra.mxu0 0.0
  %47 = vmatprep.subr.mxu0 0.0
  %48 = vmatpush1.msra.mxu0 0.0
  %49 = vmatprep.subr.mxu0 0.0
  %50 = vmatpush1.msra.mxu0 %v22
  %51 = vmatprep.subr.mxu0 0.0
  %52 = vmatpush1.msra.mxu0 %v21
  %53 = vmatprep.subr.mxu0 0.0
  %54 = vmatpush1.msra.mxu0 %v20
  %55 = vmatprep.subr.mxu0 0.0
  %56 = vmatpush1.msra.mxu0 %v19
  %57 = vmatprep.subr.mxu0 0.0
  %58 = vmatpush1.msra.mxu0 %v18
  %59 = vmatprep.subr.mxu0 0.0
  %60 = vmatpush1.msra.mxu0 %v17
  %61 = vmatprep.subr.mxu0 0.0
  %62 = vmatpush1.msra.mxu0 %v16
  %63 = vmatprep.subr.mxu0 0.0
  %64 = vmatpush1.msra.mxu0 %v15
  %65 = vmatprep.subr.mxu0 0.0
  %66 = vmatpush2.msra.mxu0 0.0
  %67 = vmatprep.subr.mxu0 0.0
  %68 = vmatpush2.msra.mxu0 0.0
  %69 = vmatprep.subr.mxu0 0.0
  %70 = vmatpush2.msra.mxu0 0.0
  %71 = vmatprep.subr.mxu0 0.0
  %72 = vmatpush2.msra.mxu0 0.0
  %73 = vmatprep.subr.mxu0 0.0
  %74 = vmatpush2.msra.mxu0 0.0
  %75 = vmatprep.subr.mxu0 0.0
  %76 = vmatpush2.msra.mxu0 0.0
  %77 = vmatprep.subr.mxu0 0.0
  %78 = vmatpush2.msra.mxu0 0.0
  %79 = vmatprep.subr.mxu0 0.0
  %80 = vmatpush2.msra.mxu0 0.0
  %81 = vmatprep.subr.mxu0 0.0
  %82 = vmatpush2.msra.mxu0 0.0
  %83 = vmatprep.subr.mxu0 0.0
  %84 = vmatpush2.msra.mxu0 0.0
  %85 = vmatprep.subr.mxu0 0.0
  %86 = vmatpush2.msra.mxu0 0.0
  %87 = vmatprep.subr.mxu0 0.0
  %88 = vmatpush2.msra.mxu0 0.0
  %89 = vmatprep.subr.mxu0 0.0
  %90 = vmatpush2.msra.mxu0 0.0
  %91 = vmatprep.subr.mxu0 0.0
  %92 = vmatpush2.msra.mxu0 0.0
  %93 = vmatprep.subr.mxu0 0.0
  %94 = vmatpush2.msra.mxu0 0.0
  %95 = vmatprep.subr.mxu0 0.0
  %96 = vmatpush2.msra.mxu0 0.0
  %97 = vmatprep.mubr.f32.mxu0 0.0
  %98 = vmatmul.mubr.f32.gmra.mxu0 %v31
  %v99 = vpop.f32.mrf.mxu0
  %v100 = vadd.f32 %v27, %v99
  %v101 = vpop.f32.mrf.mxu0
  %102 = vdwg.mxu0
  %103 = vst [vmem:[%s3] sm:$0x7] %v100
  // Predicated region
  $region14: #{output_conv_forward.1} parent=0 // pred_check
    _
  $region15: #{output_conv_forward.1} parent=0 // pred_check_branch
    %105 = sbr.rel (0) target = $region17
  $region16: #{output_conv_forward.1} parent=0 // pred_region
    _
  $region17: #{output_conv_forward.1} parent=0 // pred_fallthru
    _
  // Predicated region
  $region18: #{output_conv_forward.1} parent=0 // pred_check
    _
  $region19: #{output_conv_forward.1} parent=0 // pred_check_branch
    %107 = sbr.rel (0) target = $region21
  $region20: #{output_conv_forward.1} parent=0 // pred_region
    _
  $region21: #{output_conv_forward.1} parent=0 // pred_fallthru
    _

</llo_original>
